<compile_context>
chip_gen: v7x
topology: tpu7x:2x2x1
jax: 0.10.0
libtpu: 0.0.40
codegen_flags: <defaults>
</compile_context>

<pallas_src>
import functools

import jax
import jax.numpy as jnp
from jax import lax
from jax.experimental import pallas as pl
from jax.experimental.pallas import tpu as pltpu

LEAKY_SLOPE = 0.2
BN_EPS = 1e-5
_VMEM_LIMIT_BYTES = 32 * 1024 * 1024


def _round_up(x, m):
    return (x + m - 1) // m * m


def _pick_tm(m, kp):
    """Row-tile for the (tm, kp) bf16 patches block: <= ~2 MiB, multiple of 64."""
    tm = 64
    for cand in (512, 256, 128, 64):
        if cand * kp * 2 <= 2 * 1024 * 1024:
            tm = cand
            break
    return min(tm, _round_up(max(m, 1), 64))


# ---------------------------------------------------------------------------
# Kernel 1: fused conv-as-matmul:
#   y = act(patches_tile @ W + b), with optional fused per-channel BN partial
#   statistics (sum / sum-of-squares of the f32 accumulator) per M tile.
# Weights are a single VMEM-resident block (constant index_map).
# ---------------------------------------------------------------------------
def _conv_mm_kernel(x_ref, w_ref, b_ref, y_ref, *stat_refs, slope, with_stats,
                    m_valid, block_m, mask_rows):
    i = pl.program_id(0)
    acc = jnp.dot(x_ref[...], w_ref[...], preferred_element_type=jnp.float32)
    acc = acc + b_ref[...]                       # zeros for bias-free BN convs

    if with_stats:
        s_ref, q_ref = stat_refs
        yv = acc
        if mask_rows:                            # zero out padded M rows
            rows = i * block_m + lax.broadcasted_iota(jnp.int32, (block_m, 1), 0)
            yv = jnp.where(rows < m_valid, acc, 0.0)
        y3 = yv.reshape(block_m // 8, 8, yv.shape[-1])
        s_ref[...] = jnp.sum(y3, axis=0)
        q_ref[...] = jnp.sum(y3 * y3, axis=0)

    y = acc
    if slope is not None:
        y = jnp.where(y >= 0.0, y, y * slope)
    y_ref[...] = y.astype(y_ref.dtype)


def _conv_matmul(patches, w_mat, bias_p, *, slope, with_stats, out_dtype):
    """patches: (M, K) bf16, w_mat: (K, Np) bf16, bias_p: (1, Np) f32."""
    m, kp = patches.shape
    np_ = w_mat.shape[1]
    tm = _pick_tm(m, kp)
    mp = _round_up(m, tm)
    if mp != m:
        patches = jnp.pad(patches, ((0, mp - m), (0, 0)))
    gi = mp // tm

    kern = functools.partial(_conv_mm_kernel, slope=slope, with_stats=with_stats,
                             m_valid=m, block_m=tm, mask_rows=(mp != m))

    in_specs = [
        pl.BlockSpec((tm, kp), lambda i: (i, 0)),      # patches tile, full K
        pl.BlockSpec((kp, np_), lambda i: (0, 0)),     # whole weight, VMEM-resident
        pl.BlockSpec((1, np_), lambda i: (0, 0)),      # bias row
    ]
    y_spec = pl.BlockSpec((tm, np_), lambda i: (i, 0))
    y_shape = jax.ShapeDtypeStruct((mp, np_), out_dtype)

    if with_stats:
        out_shape = (y_shape,
                     jax.ShapeDtypeStruct((gi * 8, np_), jnp.float32),
                     jax.ShapeDtypeStruct((gi * 8, np_), jnp.float32))
        out_specs = (y_spec,
                     pl.BlockSpec((8, np_), lambda i: (i, 0)),
                     pl.BlockSpec((8, np_), lambda i: (i, 0)))
    else:
        out_shape = y_shape
        out_specs = y_spec

    outs = pl.pallas_call(
        kern,
        out_shape=out_shape,
        grid_spec=pltpu.PrefetchScalarGridSpec(
            num_scalar_prefetch=0,
            grid=(gi,),
            in_specs=in_specs,
            out_specs=out_specs,
        ),
        compiler_params=pltpu.CompilerParams(
            dimension_semantics=("parallel",),
            vmem_limit_bytes=_VMEM_LIMIT_BYTES),
    )(patches, w_mat, bias_p)

    if with_stats:
        return outs
    return outs, None, None


# ---------------------------------------------------------------------------
# Kernel 2: fused per-channel affine (folded BatchNorm) + LeakyReLU.
# Reads/writes bf16 slabs; computes in f32. Row tile capped at 512.
# ---------------------------------------------------------------------------
def _affine_act_kernel(y_ref, sc_ref, sh_ref, o_ref, *, slope):
    z = y_ref[...].astype(jnp.float32) * sc_ref[...] + sh_ref[...]
    o_ref[...] = jnp.where(z >= 0.0, z, z * slope).astype(o_ref.dtype)


def _affine_leaky(y_pad, scale_p, shift_p, slope, out_dtype):
    mp, np_ = y_pad.shape
    tm = 512
    while mp % tm and tm > 8:
        tm //= 2
    return pl.pallas_call(
        functools.partial(_affine_act_kernel, slope=slope),
        out_shape=jax.ShapeDtypeStruct((mp, np_), out_dtype),
        grid_spec=pltpu.PrefetchScalarGridSpec(
            num_scalar_prefetch=0,
            grid=(mp // tm,),
            in_specs=[
                pl.BlockSpec((tm, np_), lambda i: (i, 0)),
                pl.BlockSpec((1, np_), lambda i: (0, 0)),
                pl.BlockSpec((1, np_), lambda i: (0, 0)),
            ],
            out_specs=pl.BlockSpec((tm, np_), lambda i: (i, 0)),
        ),
        compiler_params=pltpu.CompilerParams(
            dimension_semantics=("parallel",),
            vmem_limit_bytes=_VMEM_LIMIT_BYTES),
    )(y_pad, scale_p, shift_p)


# ---------------------------------------------------------------------------
# Wrapper-side layout plumbing (no FLOPs): 4x4 im2col + parameter reshapes.
# ---------------------------------------------------------------------------
def _im2col_4x4(x_nhwc, stride, cp):
    """(N,H,W,C) bf16 -> (N*Ho*Wo, 16*cp) bf16, channel dim zero-padded to cp."""
    n, h, w, c = x_nhwc.shape
    ho = (h + 2 - 4) // stride + 1
    wo = (w + 2 - 4) // stride + 1
    xp = jnp.pad(x_nhwc, ((0, 0), (1, 1), (1, 1), (0, cp - c)))
    cols = []
    for kh in range(4):
        for kw in range(4):
            cols.append(xp[:, kh:kh + (ho - 1) * stride + 1:stride,
                           kw:kw + (wo - 1) * stride + 1:stride, :])
    patches = jnp.stack(cols, axis=3)                 # (N, Ho, Wo, 16, cp)
    return patches.reshape(n * ho * wo, 16 * cp), (n, ho, wo)


def _weight_matrix(w_oihw, cp, np_):
    cout, cin = w_oihw.shape[0], w_oihw.shape[1]
    w = jnp.transpose(w_oihw, (2, 3, 1, 0))           # (4,4,cin,cout)
    w = jnp.pad(w, ((0, 0), (0, 0), (0, cp - cin), (0, np_ - cout)))
    return w.reshape(16 * cp, np_).astype(jnp.bfloat16)


def _conv2d_pallas(x_nhwc, w_oihw, bias, stride, slope, out_dtype):
    cout, cin = w_oihw.shape[0], w_oihw.shape[1]
    cp = _round_up(cin, 8)                            # 16*cp is a multiple of 128
    np_ = _round_up(cout, 128)
    patches, (n, ho, wo) = _im2col_4x4(x_nhwc.astype(jnp.bfloat16), stride, cp)
    wm = _weight_matrix(w_oihw, cp, np_)
    bp = jnp.zeros((1, np_), jnp.float32)
    if bias is not None:
        bp = bp.at[0, :cout].set(bias.astype(jnp.float32))
    y_pad, _, _ = _conv_matmul(patches, wm, bp, slope=slope,
                               with_stats=False, out_dtype=out_dtype)
    return y_pad[:n * ho * wo, :cout].reshape(n, ho, wo, cout)


def _conv2d_bn_leaky_pallas(x_nhwc, w_oihw, gamma, beta, stride,
                            slope=LEAKY_SLOPE, eps=BN_EPS):
    cout, cin = w_oihw.shape[0], w_oihw.shape[1]
    cp = _round_up(cin, 8)
    np_ = _round_up(cout, 128)
    patches, (n, ho, wo) = _im2col_4x4(x_nhwc.astype(jnp.bfloat16), stride, cp)
    m = n * ho * wo
    wm = _weight_matrix(w_oihw, cp, np_)
    bp = jnp.zeros((1, np_), jnp.float32)             # bias=False for BN convs

    # conv + fused per-tile BN partial statistics (f32) in one pass
    y_pad, s_part, q_part = _conv_matmul(patches, wm, bp, slope=None,
                                         with_stats=True, out_dtype=jnp.bfloat16)

    # BatchNorm finalization (O(C) scalar work in plain JAX).
    # Note: single-pass E[x^2]-E[x]^2 in f32; fine for conv outputs with
    # standard (roughly zero-mean) statistics.
    csum = jnp.sum(s_part, axis=0)[:cout]
    csq = jnp.sum(q_part, axis=0)[:cout]
    mean = csum / m
    var = jnp.maximum(csq / m - mean * mean, 0.0)
    scale = gamma.astype(jnp.float32) / jnp.sqrt(var + eps)
    shift = beta.astype(jnp.float32) - mean * scale
    scale_p = jnp.zeros((1, np_), jnp.float32).at[0, :cout].set(scale)
    shift_p = jnp.zeros((1, np_), jnp.float32).at[0, :cout].set(shift)

    z_pad = _affine_leaky(y_pad, scale_p, shift_p, slope, jnp.bfloat16)
    return z_pad[:m, :cout].reshape(n, ho, wo, cout)


def discriminator_forward_pallas(x_nchw, w0, b0, bn_layers, w_last, b_last):
    """Forward pass of NLayerDiscriminator; all conv/norm/act math in Pallas."""
    y = jnp.transpose(x_nchw, (0, 2, 3, 1))                       # NHWC
    y = _conv2d_pallas(y, w0, b0, stride=2, slope=LEAKY_SLOPE,
                       out_dtype=jnp.bfloat16)                    # conv + leaky
    for (w, g, be, s) in bn_layers:                               # conv + BN + leaky
        y = _conv2d_bn_leaky_pallas(y, w, g, be, stride=s)
    y = _conv2d_pallas(y, w_last, b_last, stride=1, slope=None,
                       out_dtype=jnp.float32)                     # final 1-ch conv
    return jnp.transpose(y, (0, 3, 1, 2))                         # NCHW


# ---------------------------------------------------------------------------
# Pure-JAX f32 reference (independent check of the Pallas pipeline)
# ---------------------------------------------------------------------------
def _ref_conv(x, w, b, stride):
    y = lax.conv_general_dilated(
        x, w, window_strides=(stride, stride), padding=[(1, 1), (1, 1)],
        dimension_numbers=("NCHW", "OIHW", "NCHW"))
    if b is not None:
        y = y + b[None, :, None, None]
    return y


def _ref_forward(x, w0, b0, bn_layers, w_last, b_last):
    y = _ref_conv(x, w0, b0, 2)
    y = jnp.where(y >= 0, y, LEAKY_SLOPE * y)
    for (w, g, be, s) in bn_layers:
        y = _ref_conv(y, w, None, s)
        mean = jnp.mean(y, axis=(0, 2, 3))
        var = jnp.var(y, axis=(0, 2, 3))
        y = (y - mean[None, :, None, None]) / jnp.sqrt(var + BN_EPS)[None, :, None, None]
        y = y * g[None, :, None, None] + be[None, :, None, None]
        y = jnp.where(y >= 0, y, LEAKY_SLOPE * y)
    return _ref_conv(y, w_last, b_last, 1)


# ---------------------------------------------------------------------------
if __name__ == "__main__":
    key = jax.random.PRNGKey(0)
    ks = jax.random.split(key, 16)

    # Config consistent with NLayerDiscriminator(input_nc=3, ndf=8, n_layers=3).
    # Spatial 32x32 keeps all 5 convs valid: 32->16->8->4->3->2.
    N, C, H, W = 2, 3, 32, 32
    ndf = 8
    x = jax.random.normal(ks[0], (N, C, H, W), jnp.float32)

    def mk_w(k, cout, cin):
        return jax.random.normal(k, (cout, cin, 4, 4), jnp.float32) / jnp.sqrt(cin * 16.0)

    chans = [C, ndf, ndf * 2, ndf * 4, ndf * 8]        # 3 -> 8 -> 16 -> 32 -> 64 -> 1
    strides = [2, 2, 1]                                # the three normalized convs

    w0 = mk_w(ks[1], chans[1], chans[0])
    b0 = 0.1 * jax.random.normal(ks[2], (chans[1],), jnp.float32)

    bn_layers = []
    kidx = 3
    for li in range(3):
        cin, cout = chans[1 + li], chans[2 + li]
        w = mk_w(ks[kidx], cout, cin); kidx += 1
        g = 1.0 + 0.1 * jax.random.normal(ks[kidx], (cout,), jnp.float32); kidx += 1
        be = 0.1 * jax.random.normal(ks[kidx], (cout,), jnp.float32); kidx += 1
        bn_layers.append((w, g, be, strides[li]))

    w_last = mk_w(ks[kidx], 1, chans[4]); kidx += 1
    b_last = 0.1 * jax.random.normal(ks[kidx], (1,), jnp.float32)

    out = discriminator_forward_pallas(x, w0, b0, bn_layers, w_last, b_last)
    out = jax.block_until_ready(out)

    ref = _ref_forward(x, w0, b0, bn_layers, w_last, b_last)
    assert out.shape == ref.shape == (N, 1, 2, 2), (out.shape, ref.shape)
    # bf16 operands + bf16 intermediates -> compare against the f32 reference
    # with tolerances appropriate for 5 stacked bf16 matmul layers.
    diff = out - ref
    rel = jnp.sqrt(jnp.sum(diff * diff)) / (jnp.sqrt(jnp.sum(ref * ref)) + 1e-12)
    assert bool(rel < 0.05), ("relative error too large", float(rel))
    assert bool(jnp.allclose(out, ref, rtol=0.1, atol=0.1)), (out, ref)

    print("KERNEL_OK")
</pallas_src>

<mosaic_0001>
module attributes {stable_mosaic.version = 11 : i64} {
  func.func @_conv_mm_kernel(%arg0: i32, %arg1: memref<512x128xbf16, #tpu.memory_space<vmem>>, %arg2: memref<128x128xbf16, #tpu.memory_space<vmem>>, %arg3: memref<1x128xf32, #tpu.memory_space<vmem>>, %arg4: memref<512x128xbf16, #tpu.memory_space<vmem>>) attributes {dimension_semantics = [#tpu.dimension_semantics<parallel>], iteration_bounds = array<i64: 1>, scalar_prefetch = 0 : i64, scratch_operands = 0 : i64, tpu.core_type = #tpu.core_type<tc>, window_params = [{transform_indices = @transform_0, window_bounds = array<i64: 512, 128>}, {pipeline_mode = #tpu.pipeline_mode<synchronous>, transform_indices = @transform_1, window_bounds = array<i64: 128, 128>}, {pipeline_mode = #tpu.pipeline_mode<synchronous>, transform_indices = @transform_2, window_bounds = array<i64: 1, 128>}, {transform_indices = @transform_3, window_bounds = array<i64: 512, 128>}]} {
    %c0 = arith.constant 0 : index
    %c0_0 = arith.constant 0 : index
    %0 = vector.load %arg1[%c0, %c0_0] : memref<512x128xbf16, #tpu.memory_space<vmem>>, vector<512x128xbf16>
    %c0_1 = arith.constant 0 : index
    %c0_2 = arith.constant 0 : index
    %1 = vector.load %arg2[%c0_1, %c0_2] : memref<128x128xbf16, #tpu.memory_space<vmem>>, vector<128x128xbf16>
    %cst = arith.constant dense<0.000000e+00> : vector<512x128xf32>
    %2 = tpu.matmul %0, %1, %cst {dimension_numbers = #tpu.dot_dimension_numbers<[1], [0], [0], [1], [0, 0, 1, 1], [], []>} : vector<512x128xbf16>, vector<128x128xbf16>, vector<512x128xf32> -> vector<512x128xf32>
    %c0_3 = arith.constant 0 : index
    %c0_4 = arith.constant 0 : index
    %3 = vector.load %arg3[%c0_3, %c0_4] : memref<1x128xf32, #tpu.memory_space<vmem>>, vector<1x128xf32>
    %4 = vector.broadcast %3 : vector<1x128xf32> to vector<512x128xf32>
    %5 = arith.addf %2, %4 : vector<512x128xf32>
    %cst_5 = arith.constant 0.000000e+00 : f32
    %6 = vector.broadcast %cst_5 : f32 to vector<512x128xf32>
    %7 = arith.cmpf oge, %5, %6 : vector<512x128xf32>
    %cst_6 = arith.constant 2.000000e-01 : f32
    %8 = vector.broadcast %cst_6 : f32 to vector<512x128xf32>
    %9 = arith.mulf %5, %8 : vector<512x128xf32>
    %10 = arith.select %7, %5, %9 : vector<512x128xi1>, vector<512x128xf32>
    %11 = arith.truncf %10 : vector<512x128xf32> to vector<512x128xbf16>
    %c0_7 = arith.constant 0 : index
    %c0_8 = arith.constant 0 : index
    %12 = vector.load %arg4[%c0_7, %c0_8] : memref<512x128xbf16, #tpu.memory_space<vmem>>, vector<512x128xbf16>
    tpu.vector_store %arg4[%c0_7, %c0_8], %11 {strides = array<i32>} : memref<512x128xbf16, #tpu.memory_space<vmem>>, vector<512x128xbf16>,
    return
  }
  func.func @transform_0(%arg0: i32) -> (i32, i32) {
    %c0_i32 = arith.constant 0 : i32
    %c0_i32_0 = arith.constant 0 : i32
    return %arg0, %c0_i32 : i32, i32
  }
  func.func @transform_1(%arg0: i32) -> (i32, i32) {
    %c0_i32 = arith.constant 0 : i32
    %c0_i32_0 = arith.constant 0 : i32
    %c0_i32_1 = arith.constant 0 : i32
    return %c0_i32, %c0_i32_0 : i32, i32
  }
  func.func @transform_2(%arg0: i32) -> (i32, i32) {
    %c0_i32 = arith.constant 0 : i32
    %c0_i32_0 = arith.constant 0 : i32
    %c0_i32_1 = arith.constant 0 : i32
    return %c0_i32, %c0_i32_0 : i32, i32
  }
  func.func @transform_3(%arg0: i32) -> (i32, i32) {
    %c0_i32 = arith.constant 0 : i32
    %c0_i32_0 = arith.constant 0 : i32
    return %arg0, %c0_i32 : i32, i32
  }
}

</mosaic_0001>

<llo_original>
// kernel: tpu_custom_call.1
$region0: #{tpu_custom_call.1}
  #allocation0 [shape = 'u32[]', space=smem, size = 0x4, offset = 0x4, fixed_abs, tag = 'smem constant byte address 0x4 - core index']
  #allocation1 [shape = 'u32[144,128]{1,0:T(1,128)}', space=vmem, size = 0x12000, scoped, tag = 'internal scratch']
  %s0 = inlined_call_operand.hbm [shape: bf16[512,128], index: 0, kind: input, shape index: {}]
  %s1 = inlined_call_operand.hbm [shape: bf16[128,128], index: 1, kind: input, shape index: {}]
  %s2 = inlined_call_operand.vmem [shape: f32[1,128], index: 2, kind: input, shape index: {}]
  %s3 = inlined_call_operand.hbm [shape: bf16[512,128], index: 3, kind: output, shape index: {}]
  %s4 = sld [smem:[#allocation0]]
  $region30: #{tpu_custom_call.1} parent=0
    _
  %s6 = ssub.s32 1, %s4
  %s7 = scalar_select 0, %s6, %s4
  $region1: #{tpu_custom_call.1} parent=0
    #allocation2 [shape = 'u8[131072]{0}', space=vmem, size = 0x20000, scoped, tag = 'input window, operand 0, single buffered']
    #allocation3 [shape = 's32[1]{0}', space=sflag, size = 0x4, scoped, tag = 'scoped memory for tpu_custom_call.1']
    #allocation4 [shape = 's32[1]{0}', space=sflag, size = 0x4, scoped, tag = 'scoped memory for tpu_custom_call.1']
    #allocation5 [shape = 'u8[32768]{0}', space=vmem, size = 0x8000, scoped, tag = 'input window, operand 1, single buffered']
    #allocation6 [shape = 's32[1]{0}', space=sflag, size = 0x4, scoped, tag = 'scoped memory for tpu_custom_call.1']
    #allocation7 [shape = 'u8[131072]{0}', space=vmem, size = 0x20000, scoped, tag = 'output window, operand 0, single buffered']
    %8 = vsyncpa [#allocation3], 0
    %9 = vsyncpa [#allocation6], 0
    %10 = vsyncpa [#allocation4], 0
    // Predicated region
    $region2: #{tpu_custom_call.1} parent=1 // pred_check
      _
    $region3: #{tpu_custom_call.1} parent=1 // pred_check_branch
      %12 = sbr.rel (0) target = $region5
    $region4: #{tpu_custom_call.1} parent=1 // pred_region
      %s14 = ssub.s32 4096, 4096
      %15 = vsyncadd [#allocation3], %s14
      %s16 = sshll.u32 [#allocation2], 4
      %s17 = int_to_ptr.vmem [resolvable:$true] %s16
      %22 = dma.hbm_to_vmem [thread:$0]  %s0, 4096, %s17, [#allocation3], 64, 64, 4
    $region5: #{tpu_custom_call.1} parent=1 // pred_fallthru
      _
    // Predicated region
    $region6: #{tpu_custom_call.1} parent=1 // pred_check
      _
    $region7: #{tpu_custom_call.1} parent=1 // pred_check_branch
      %24 = sbr.rel (0) target = $region9
    $region8: #{tpu_custom_call.1} parent=1 // pred_region
      %s26 = ssub.s32 1024, 1024
      %27 = vsyncadd [#allocation6], %s26
      %s28 = sshll.u32 [#allocation5], 4
      %s29 = int_to_ptr.vmem [resolvable:$true] %s28
      %34 = dma.hbm_to_vmem [thread:$0]  %s1, 1024, %s29, [#allocation6], 64, 64, 4
    $region9: #{tpu_custom_call.1} parent=1 // pred_fallthru
      _
    // Predicated region
    $region10: #{tpu_custom_call.1} parent=1 // pred_check
      _
    $region11: #{tpu_custom_call.1} parent=1 // pred_check_branch
      %36 = sbr.rel (0) target = $region13
    $region12: #{tpu_custom_call.1} parent=1 // pred_region
      _
    $region13: #{tpu_custom_call.1} parent=1 // pred_fallthru
      _
    // Predicated region
    $region14: #{tpu_custom_call.1} parent=1 // pred_check
      _
    $region15: #{tpu_custom_call.1} parent=1 // pred_check_branch
      %38 = sbr.rel (0) target = $region17
    $region16: #{tpu_custom_call.1} parent=1 // pred_region
      %39 = dma.done [#allocation3], 4096
    $region17: #{tpu_custom_call.1} parent=1 // pred_fallthru
      _
    // Predicated region
    $region18: #{tpu_custom_call.1} parent=1 // pred_check
      _
    $region19: #{tpu_custom_call.1} parent=1 // pred_check_branch
      %41 = sbr.rel (0) target = $region21
    $region20: #{tpu_custom_call.1} parent=1 // pred_region
      %42 = dma.done [#allocation6], 1024
    $region21: #{tpu_custom_call.1} parent=1 // pred_fallthru
      _
    %v44 = vld [vmem:[#allocation2] sm:$0xf]
    %v45 = vld [vmem:[#allocation2 + $0x4] sm:$0xf]
    %v46 = vld [vmem:[#allocation2 + $0x8] sm:$0xf]
    %v47 = vld [vmem:[#allocation2 + $0xc] sm:$0xf]
    %v48 = vld [vmem:[#allocation2 + $0x10] sm:$0xf]
    %v49 = vld [vmem:[#allocation2 + $0x14] sm:$0xf]
    %v50 = vld [vmem:[#allocation2 + $0x18] sm:$0xf]
    %v51 = vld [vmem:[#allocation2 + $0x1c] sm:$0xf]
    %v52 = vld [vmem:[#allocation2 + $0x20] sm:$0xf]
    %v53 = vld [vmem:[#allocation2 + $0x24] sm:$0xf]
    %v54 = vld [vmem:[#allocation2 + $0x28] sm:$0xf]
    %v55 = vld [vmem:[#allocation2 + $0x2c] sm:$0xf]
    %v56 = vld [vmem:[#allocation2 + $0x30] sm:$0xf]
    %v57 = vld [vmem:[#allocation2 + $0x34] sm:$0xf]
    %v58 = vld [vmem:[#allocation2 + $0x38] sm:$0xf]
    %v59 = vld [vmem:[#allocation2 + $0x3c] sm:$0xf]
    %v60 = vld [vmem:[#allocation2 + $0x40] sm:$0xf]
    %v61 = vld [vmem:[#allocation2 + $0x44] sm:$0xf]
    %v62 = vld [vmem:[#allocation2 + $0x48] sm:$0xf]
    %v63 = vld [vmem:[#allocation2 + $0x4c] sm:$0xf]
    %v64 = vld [vmem:[#allocation2 + $0x50] sm:$0xf]
    %v65 = vld [vmem:[#allocation2 + $0x54] sm:$0xf]
    %v66 = vld [vmem:[#allocation2 + $0x58] sm:$0xf]
    %v67 = vld [vmem:[#allocation2 + $0x5c] sm:$0xf]
    %v68 = vld [vmem:[#allocation2 + $0x60] sm:$0xf]
    %v69 = vld [vmem:[#allocation2 + $0x64] sm:$0xf]
    %v70 = vld [vmem:[#allocation2 + $0x68] sm:$0xf]
    %v71 = vld [vmem:[#allocation2 + $0x6c] sm:$0xf]
    %v72 = vld [vmem:[#allocation2 + $0x70] sm:$0xf]
    %v73 = vld [vmem:[#allocation2 + $0x74] sm:$0xf]
    %v74 = vld [vmem:[#allocation2 + $0x78] sm:$0xf]
    %v75 = vld [vmem:[#allocation2 + $0x7c] sm:$0xf]
    %v76 = vld [vmem:[#allocation2 + $0x80] sm:$0xf]
    %v77 = vld [vmem:[#allocation2 + $0x84] sm:$0xf]
    %v78 = vld [vmem:[#allocation2 + $0x88] sm:$0xf]
    %v79 = vld [vmem:[#allocation2 + $0x8c] sm:$0xf]
    %v80 = vld [vmem:[#allocation2 + $0x90] sm:$0xf]
    %v81 = vld [vmem:[#allocation2 + $0x94] sm:$0xf]
    %v82 = vld [vmem:[#allocation2 + $0x98] sm:$0xf]
    %v83 = vld [vmem:[#allocation2 + $0x9c] sm:$0xf]
    %v84 = vld [vmem:[#allocation2 + $0xa0] sm:$0xf]
    %v85 = vld [vmem:[#allocation2 + $0xa4] sm:$0xf]
    %v86 = vld [vmem:[#allocation2 + $0xa8] sm:$0xf]
    %v87 = vld [vmem:[#allocation2 + $0xac] sm:$0xf]
    %v88 = vld [vmem:[#allocation2 + $0xb0] sm:$0xf]
    %v89 = vld [vmem:[#allocation2 + $0xb4] sm:$0xf]
    %v90 = vld [vmem:[#allocation2 + $0xb8] sm:$0xf]
    %v91 = vld [vmem:[#allocation2 + $0xbc] sm:$0xf]
    %v92 = vld [vmem:[#allocation2 + $0xc0] sm:$0xf]
    %v93 = vld [vmem:[#allocation2 + $0xc4] sm:$0xf]
    %v94 = vld [vmem:[#allocation2 + $0xc8] sm:$0xf]
    %v95 = vld [vmem:[#allocation2 + $0xcc] sm:$0xf]
    %v96 = vld [vmem:[#allocation2 + $0xd0] sm:$0xf]
    %v97 = vld [vmem:[#allocation2 + $0xd4] sm:$0xf]
    %v98 = vld [vmem:[#allocation2 + $0xd8] sm:$0xf]
    %v99 = vld [vmem:[#allocation2 + $0xdc] sm:$0xf]
    %v100 = vld [vmem:[#allocation2 + $0xe0] sm:$0xf]
    %v101 = vld [vmem:[#allocation2 + $0xe4] sm:$0xf]
    %v102 = vld [vmem:[#allocation2 + $0xe8] sm:$0xf]
    %v103 = vld [vmem:[#allocation2 + $0xec] sm:$0xf]
    %v104 = vld [vmem:[#allocation2 + $0xf0] sm:$0xf]
    %v105 = vld [vmem:[#allocation2 + $0xf4] sm:$0xf]
    %v106 = vld [vmem:[#allocation2 + $0xf8] sm:$0xf]
    %v107 = vld [vmem:[#allocation2 + $0xfc] sm:$0xf]
    %v108 = vld [vmem:[#allocation5] sm:$0xf]
    %v109 = vld [vmem:[#allocation5 + $0x4] sm:$0xf]
    %v110 = vld [vmem:[#allocation5 + $0x8] sm:$0xf]
    %v111 = vld [vmem:[#allocation5 + $0xc] sm:$0xf]
    %v112 = vld [vmem:[#allocation5 + $0x10] sm:$0xf]
    %v113 = vld [vmem:[#allocation5 + $0x14] sm:$0xf]
    %v114 = vld [vmem:[#allocation5 + $0x18] sm:$0xf]
    %v115 = vld [vmem:[#allocation5 + $0x1c] sm:$0xf]
    %v116 = vld [vmem:[#allocation5 + $0x20] sm:$0xf]
    %v117 = vld [vmem:[#allocation5 + $0x24] sm:$0xf]
    %v118 = vld [vmem:[#allocation5 + $0x28] sm:$0xf]
    %v119 = vld [vmem:[#allocation5 + $0x2c] sm:$0xf]
    %v120 = vld [vmem:[#allocation5 + $0x30] sm:$0xf]
    %v121 = vld [vmem:[#allocation5 + $0x34] sm:$0xf]
    %v122 = vld [vmem:[#allocation5 + $0x38] sm:$0xf]
    %v123 = vld [vmem:[#allocation5 + $0x3c] sm:$0xf]
    %v124 = vld [vmem:[%s2] sm:$0x1]
    %v126 = vlaneseq
    %v127 = vshrl.u32 %v126, 7
    %v128 = vsub.s32 0, %v127
    %v129 = vrot.slane %v124, %v128
    %v195 = vunpack.c.l.b16 %v44
    %v196 = vunpack.c.l.b16 %v45
    %v197 = vunpack.c.l.b16 %v46
    %v198 = vunpack.c.l.b16 %v47
    %v199 = vunpack.c.l.b16 %v48
    %v200 = vunpack.c.l.b16 %v49
    %v201 = vunpack.c.l.b16 %v50
    %v202 = vunpack.c.l.b16 %v51
    %v203 = vunpack.c.l.b16 %v52
    %v204 = vunpack.c.l.b16 %v53
    %v205 = vunpack.c.l.b16 %v54
    %v206 = vunpack.c.l.b16 %v55
    %v207 = vunpack.c.l.b16 %v56
    %v208 = vunpack.c.l.b16 %v57
    %v209 = vunpack.c.l.b16 %v58
    %v210 = vunpack.c.l.b16 %v59
    %v211 = vunpack.c.l.b16 %v60
    %v212 = vunpack.c.l.b16 %v61
    %v213 = vunpack.c.l.b16 %v62
    %v214 = vunpack.c.l.b16 %v63
    %v215 = vunpack.c.l.b16 %v64
    %v216 = vunpack.c.l.b16 %v65
    %v217 = vunpack.c.l.b16 %v66
    %v218 = vunpack.c.l.b16 %v67
    %v219 = vunpack.c.l.b16 %v68
    %v220 = vunpack.c.l.b16 %v69
    %v221 = vunpack.c.l.b16 %v70
    %v222 = vunpack.c.l.b16 %v71
    %v223 = vunpack.c.l.b16 %v72
    %v224 = vunpack.c.l.b16 %v73
    %v225 = vunpack.c.l.b16 %v74
    %v226 = vunpack.c.l.b16 %v75
    %v227 = vunpack.c.l.b16 %v76
    %v228 = vunpack.c.l.b16 %v77
    %v229 = vunpack.c.l.b16 %v78
    %v230 = vunpack.c.l.b16 %v79
    %v231 = vunpack.c.l.b16 %v80
    %v232 = vunpack.c.l.b16 %v81
    %v233 = vunpack.c.l.b16 %v82
    %v234 = vunpack.c.l.b16 %v83
    %v235 = vunpack.c.l.b16 %v84
    %v236 = vunpack.c.l.b16 %v85
    %v237 = vunpack.c.l.b16 %v86
    %v238 = vunpack.c.l.b16 %v87
    %v239 = vunpack.c.l.b16 %v88
    %v240 = vunpack.c.l.b16 %v89
    %v241 = vunpack.c.l.b16 %v90
    %v242 = vunpack.c.l.b16 %v91
    %v243 = vunpack.c.l.b16 %v92
    %v244 = vunpack.c.l.b16 %v93
    %v245 = vunpack.c.l.b16 %v94
    %v246 = vunpack.c.l.b16 %v95
    %v247 = vunpack.c.l.b16 %v96
    %v248 = vunpack.c.l.b16 %v97
    %v249 = vunpack.c.l.b16 %v98
    %v250 = vunpack.c.l.b16 %v99
    %v251 = vunpack.c.l.b16 %v100
    %v252 = vunpack.c.l.b16 %v101
    %v253 = vunpack.c.l.b16 %v102
    %v254 = vunpack.c.l.b16 %v103
    %v255 = vunpack.c.l.b16 %v104
    %v256 = vunpack.c.l.b16 %v105
    %v257 = vunpack.c.l.b16 %v106
    %v258 = vunpack.c.l.b16 %v107
    %v259 = vpack.c.b16 %v196, %v195
    %v260 = vpack.c.b16 %v198, %v197
    %v261 = vpack.c.b16 %v200, %v199
    %v262 = vpack.c.b16 %v202, %v201
    %v263 = vpack.c.b16 %v204, %v203
    %v264 = vpack.c.b16 %v206, %v205
    %v265 = vpack.c.b16 %v208, %v207
    %v266 = vpack.c.b16 %v210, %v209
    %v267 = vpack.c.b16 %v212, %v211
    %v268 = vpack.c.b16 %v214, %v213
    %v269 = vpack.c.b16 %v216, %v215
    %v270 = vpack.c.b16 %v218, %v217
    %v271 = vpack.c.b16 %v220, %v219
    %v272 = vpack.c.b16 %v222, %v221
    %v273 = vpack.c.b16 %v224, %v223
    %v274 = vpack.c.b16 %v226, %v225
    %v275 = vpack.c.b16 %v228, %v227
    %v276 = vpack.c.b16 %v230, %v229
    %v277 = vpack.c.b16 %v232, %v231
    %v278 = vpack.c.b16 %v234, %v233
    %v279 = vpack.c.b16 %v236, %v235
    %v280 = vpack.c.b16 %v238, %v237
    %v281 = vpack.c.b16 %v240, %v239
    %v282 = vpack.c.b16 %v242, %v241
    %v283 = vpack.c.b16 %v244, %v243
    %v284 = vpack.c.b16 %v246, %v245
    %v285 = vpack.c.b16 %v248, %v247
    %v286 = vpack.c.b16 %v250, %v249
    %v287 = vpack.c.b16 %v252, %v251
    %v288 = vpack.c.b16 %v254, %v253
    %v289 = vpack.c.b16 %v256, %v255
    %v290 = vpack.c.b16 %v258, %v257
    %v339 = vunpack.c.l.b16 %v108
    %v340 = vunpack.c.l.b16 %v109
    %v341 = vunpack.c.l.b16 %v110
    %v342 = vunpack.c.l.b16 %v111
    %v343 = vunpack.c.l.b16 %v112
    %v344 = vunpack.c.l.b16 %v113
    %v345 = vunpack.c.l.b16 %v114
    %v346 = vunpack.c.l.b16 %v115
    %v347 = vunpack.c.l.b16 %v116
    %v348 = vunpack.c.l.b16 %v117
    %v349 = vunpack.c.l.b16 %v118
    %v350 = vunpack.c.l.b16 %v119
    %v351 = vunpack.c.l.b16 %v120
    %v352 = vunpack.c.l.b16 %v121
    %v353 = vunpack.c.l.b16 %v122
    %v354 = vunpack.c.l.b16 %v123
    %v355 = vpack.c.b16 %v340, %v339
    %v356 = vpack.c.b16 %v342, %v341
    %v357 = vpack.c.b16 %v344, %v343
    %v358 = vpack.c.b16 %v346, %v345
    %v359 = vpack.c.b16 %v348, %v347
    %v360 = vpack.c.b16 %v350, %v349
    %v361 = vpack.c.b16 %v352, %v351
    %v362 = vpack.c.b16 %v354, %v353
    %371 = vmatprep.subr.bf16.mxu0 0
    %372 = vmatpush1.bf16.msra.mxu0 %v355
    %373 = vmatprep.subr.bf16.mxu0 0
    %374 = vmatpush1.bf16.msra.mxu0 %v356
    %375 = vmatprep.subr.bf16.mxu0 0
    %376 = vmatpush1.bf16.msra.mxu0 %v357
    %377 = vmatprep.subr.bf16.mxu0 0
    %378 = vmatpush1.bf16.msra.mxu0 %v358
    %379 = vmatprep.subr.bf16.mxu0 0
    %380 = vmatpush1.bf16.msra.mxu0 %v359
    %381 = vmatprep.subr.bf16.mxu0 0
    %382 = vmatpush1.bf16.msra.mxu0 %v360
    %383 = vmatprep.subr.bf16.mxu0 0
    %384 = vmatpush1.bf16.msra.mxu0 %v361
    %385 = vmatprep.subr.bf16.mxu0 0
    %386 = vmatpush1.bf16.msra.mxu0 %v362
    %387 = vmatprep.subr.bf16.mxu0 0
    %388 = vmatpush1.bf16.msra.mxu0 0
    %389 = vmatprep.subr.bf16.mxu0 0
    %390 = vmatpush1.bf16.msra.mxu0 0
    %391 = vmatprep.subr.bf16.mxu0 0
    %392 = vmatpush1.bf16.msra.mxu0 0
    %393 = vmatprep.subr.bf16.mxu0 0
    %394 = vmatpush1.bf16.msra.mxu0 0
    %395 = vmatprep.subr.bf16.mxu0 0
    %396 = vmatpush1.bf16.msra.mxu0 0
    %397 = vmatprep.subr.bf16.mxu0 0
    %398 = vmatpush1.bf16.msra.mxu0 0
    %399 = vmatprep.subr.bf16.mxu0 0
    %400 = vmatpush1.bf16.msra.mxu0 0
    %401 = vmatprep.subr.bf16.mxu0 0
    %402 = vmatpush1.bf16.msra.mxu0 0
    %403 = vmatprep.mubr.bf16.mxu0 0
    %404 = vmatmul.mubr.bf16.gmra.mrb[0].mxu0 %v259
    %v405 = vpop.f32.mrb[0].mxu0
    %v406 = vadd.f32 %v129, %v405
    %v407 = vpop.f32.mrb[0].mxu0
    %v408 = vpop.f32.mrb[0].mxu0
    %v409 = vadd.f32 %v129, %v408
    %v410 = vpop.f32.mrb[0].mxu0
    %411 = vmatprep.mubr.bf16.mxu0 0
    %412 = vmatmul.mubr.bf16.gmra.mrb[0].mxu0 %v260
    %v413 = vpop.f32.mrb[0].mxu0
    %v414 = vadd.f32 %v129, %v413
    %v415 = vpop.f32.mrb[0].mxu0
    %v416 = vpop.f32.mrb[0].mxu0
    %v417 = vadd.f32 %v129, %v416
    %v418 = vpop.f32.mrb[0].mxu0
    %419 = vmatprep.mubr.bf16.mxu0 0
    %420 = vmatmul.mubr.bf16.gmra.mrb[0].mxu0 %v261
    %v421 = vpop.f32.mrb[0].mxu0
    %v422 = vadd.f32 %v129, %v421
    %v423 = vpop.f32.mrb[0].mxu0
    %v424 = vpop.f32.mrb[0].mxu0
    %v425 = vadd.f32 %v129, %v424
    %v426 = vpop.f32.mrb[0].mxu0
    %427 = vmatprep.mubr.bf16.mxu0 0
    %428 = vmatmul.mubr.bf16.gmra.mrb[0].mxu0 %v262
    %v429 = vpop.f32.mrb[0].mxu0
    %v430 = vadd.f32 %v129, %v429
    %v431 = vpop.f32.mrb[0].mxu0
    %v432 = vpop.f32.mrb[0].mxu0
    %v433 = vadd.f32 %v129, %v432
    %v434 = vpop.f32.mrb[0].mxu0
    %435 = vmatprep.mubr.bf16.mxu0 0
    %436 = vmatmul.mubr.bf16.gmra.mrb[0].mxu0 %v263
    %v437 = vpop.f32.mrb[0].mxu0
    %v438 = vadd.f32 %v129, %v437
    %v439 = vpop.f32.mrb[0].mxu0
    %v440 = vpop.f32.mrb[0].mxu0
    %v441 = vadd.f32 %v129, %v440
    %v442 = vpop.f32.mrb[0].mxu0
    %443 = vmatprep.mubr.bf16.mxu0 0
    %444 = vmatmul.mubr.bf16.gmra.mrb[0].mxu0 %v264
    %v445 = vpop.f32.mrb[0].mxu0
    %v446 = vadd.f32 %v129, %v445
    %v447 = vpop.f32.mrb[0].mxu0
    %v448 = vpop.f32.mrb[0].mxu0
    %v449 = vadd.f32 %v129, %v448
    %v450 = vpop.f32.mrb[0].mxu0
    %451 = vmatprep.mubr.bf16.mxu0 0
    %452 = vmatmul.mubr.bf16.gmra.mrb[0].mxu0 %v265
    %v453 = vpop.f32.mrb[0].mxu0
    %v454 = vadd.f32 %v129, %v453
    %v455 = vpop.f32.mrb[0].mxu0
    %v456 = vpop.f32.mrb[0].mxu0
    %v457 = vadd.f32 %v129, %v456
    %v458 = vpop.f32.mrb[0].mxu0
    %459 = vmatprep.mubr.bf16.mxu0 0
    %460 = vmatmul.mubr.bf16.gmra.mrb[0].mxu0 %v266
    %v461 = vpop.f32.mrb[0].mxu0
    %v462 = vadd.f32 %v129, %v461
    %v463 = vpop.f32.mrb[0].mxu0
    %v464 = vpop.f32.mrb[0].mxu0
    %v465 = vadd.f32 %v129, %v464
    %v466 = vpop.f32.mrb[0].mxu0
    %467 = vmatprep.mubr.bf16.mxu0 0
    %468 = vmatmul.mubr.bf16.gmra.mrb[0].mxu0 %v267
    %v469 = vpop.f32.mrb[0].mxu0
    %v470 = vadd.f32 %v129, %v469
    %v471 = vpop.f32.mrb[0].mxu0
    %v472 = vpop.f32.mrb[0].mxu0
    %v473 = vadd.f32 %v129, %v472
    %v474 = vpop.f32.mrb[0].mxu0
    %475 = vmatprep.mubr.bf16.mxu0 0
    %476 = vmatmul.mubr.bf16.gmra.mrb[0].mxu0 %v268
    %v477 = vpop.f32.mrb[0].mxu0
    %v478 = vadd.f32 %v129, %v477
    %v479 = vpop.f32.mrb[0].mxu0
    %v480 = vpop.f32.mrb[0].mxu0
    %v481 = vadd.f32 %v129, %v480
    %v482 = vpop.f32.mrb[0].mxu0
    %483 = vmatprep.mubr.bf16.mxu0 0
    %484 = vmatmul.mubr.bf16.gmra.mrb[0].mxu0 %v269
    %v485 = vpop.f32.mrb[0].mxu0
    %v486 = vadd.f32 %v129, %v485
    %v487 = vpop.f32.mrb[0].mxu0
    %v488 = vpop.f32.mrb[0].mxu0
    %v489 = vadd.f32 %v129, %v488
    %v490 = vpop.f32.mrb[0].mxu0
    %491 = vmatprep.mubr.bf16.mxu0 0
    %492 = vmatmul.mubr.bf16.gmra.mrb[0].mxu0 %v270
    %v493 = vpop.f32.mrb[0].mxu0
    %v494 = vadd.f32 %v129, %v493
    %v495 = vpop.f32.mrb[0].mxu0
    %v496 = vpop.f32.mrb[0].mxu0
    %v497 = vadd.f32 %v129, %v496
    %v498 = vpop.f32.mrb[0].mxu0
    %499 = vmatprep.mubr.bf16.mxu0 0
    %500 = vmatmul.mubr.bf16.gmra.mrb[0].mxu0 %v271
    %v501 = vpop.f32.mrb[0].mxu0
    %v502 = vadd.f32 %v129, %v501
    %v503 = vpop.f32.mrb[0].mxu0
    %v504 = vpop.f32.mrb[0].mxu0
    %v505 = vadd.f32 %v129, %v504
    %v506 = vpop.f32.mrb[0].mxu0
    %507 = vmatprep.mubr.bf16.mxu0 0
    %508 = vmatmul.mubr.bf16.gmra.mrb[0].mxu0 %v272
    %v509 = vpop.f32.mrb[0].mxu0
    %v510 = vadd.f32 %v129, %v509
    %v511 = vpop.f32.mrb[0].mxu0
    %v512 = vpop.f32.mrb[0].mxu0
    %v513 = vadd.f32 %v129, %v512
    %v514 = vpop.f32.mrb[0].mxu0
    %515 = vmatprep.mubr.bf16.mxu0 0
    %516 = vmatmul.mubr.bf16.gmra.mrb[0].mxu0 %v273
    %v517 = vpop.f32.mrb[0].mxu0
    %v518 = vadd.f32 %v129, %v517
    %v519 = vpop.f32.mrb[0].mxu0
    %v520 = vpop.f32.mrb[0].mxu0
    %v521 = vadd.f32 %v129, %v520
    %v522 = vpop.f32.mrb[0].mxu0
    %523 = vmatprep.mubr.bf16.mxu0 0
    %524 = vmatmul.mubr.bf16.gmra.mrb[0].mxu0 %v274
    %v525 = vpop.f32.mrb[0].mxu0
    %v526 = vadd.f32 %v129, %v525
    %v527 = vpop.f32.mrb[0].mxu0
    %v528 = vpop.f32.mrb[0].mxu0
    %v529 = vadd.f32 %v129, %v528
    %v530 = vpop.f32.mrb[0].mxu0
    %531 = vmatprep.mubr.bf16.mxu0 0
    %532 = vmatmul.mubr.bf16.gmra.mrb[0].mxu0 %v275
    %v533 = vpop.f32.mrb[0].mxu0
    %v534 = vadd.f32 %v129, %v533
    %v535 = vpop.f32.mrb[0].mxu0
    %v536 = vpop.f32.mrb[0].mxu0
    %v537 = vadd.f32 %v129, %v536
    %v538 = vpop.f32.mrb[0].mxu0
    %539 = vmatprep.mubr.bf16.mxu0 0
    %540 = vmatmul.mubr.bf16.gmra.mrb[0].mxu0 %v276
    %v541 = vpop.f32.mrb[0].mxu0
    %v542 = vadd.f32 %v129, %v541
    %v543 = vpop.f32.mrb[0].mxu0
    %v544 = vpop.f32.mrb[0].mxu0
    %v545 = vadd.f32 %v129, %v544
    %v546 = vpop.f32.mrb[0].mxu0
    %547 = vmatprep.mubr.bf16.mxu0 0
    %548 = vmatmul.mubr.bf16.gmra.mrb[0].mxu0 %v277
    %v549 = vpop.f32.mrb[0].mxu0
    %v550 = vadd.f32 %v129, %v549
    %v551 = vpop.f32.mrb[0].mxu0
    %v552 = vpop.f32.mrb[0].mxu0
    %v553 = vadd.f32 %v129, %v552
    %v554 = vpop.f32.mrb[0].mxu0
    %555 = vmatprep.mubr.bf16.mxu0 0
    %556 = vmatmul.mubr.bf16.gmra.mrb[0].mxu0 %v278
    %v557 = vpop.f32.mrb[0].mxu0
    %v558 = vadd.f32 %v129, %v557
    %v559 = vpop.f32.mrb[0].mxu0
    %v560 = vpop.f32.mrb[0].mxu0
    %v561 = vadd.f32 %v129, %v560
    %v562 = vpop.f32.mrb[0].mxu0
    %563 = vmatprep.mubr.bf16.mxu0 0
    %564 = vmatmul.mubr.bf16.gmra.mrb[0].mxu0 %v279
    %v565 = vpop.f32.mrb[0].mxu0
    %v566 = vadd.f32 %v129, %v565
    %v567 = vpop.f32.mrb[0].mxu0
    %v568 = vpop.f32.mrb[0].mxu0
    %v569 = vadd.f32 %v129, %v568
    %v570 = vpop.f32.mrb[0].mxu0
    %571 = vmatprep.mubr.bf16.mxu0 0
    %572 = vmatmul.mubr.bf16.gmra.mrb[0].mxu0 %v280
    %v573 = vpop.f32.mrb[0].mxu0
    %v574 = vadd.f32 %v129, %v573
    %v575 = vpop.f32.mrb[0].mxu0
    %v576 = vpop.f32.mrb[0].mxu0
    %v577 = vadd.f32 %v129, %v576
    %v578 = vpop.f32.mrb[0].mxu0
    %579 = vmatprep.mubr.bf16.mxu0 0
    %580 = vmatmul.mubr.bf16.gmra.mrb[0].mxu0 %v281
    %v581 = vpop.f32.mrb[0].mxu0
    %v582 = vadd.f32 %v129, %v581
    %v583 = vpop.f32.mrb[0].mxu0
    %v584 = vpop.f32.mrb[0].mxu0
    %v585 = vadd.f32 %v129, %v584
    %v586 = vpop.f32.mrb[0].mxu0
    %587 = vmatprep.mubr.bf16.mxu0 0
    %588 = vmatmul.mubr.bf16.gmra.mrb[0].mxu0 %v282
    %v589 = vpop.f32.mrb[0].mxu0
    %v590 = vadd.f32 %v129, %v589
    %v591 = vpop.f32.mrb[0].mxu0
    %v592 = vpop.f32.mrb[0].mxu0
    %v593 = vadd.f32 %v129, %v592
    %v594 = vpop.f32.mrb[0].mxu0
    %595 = vmatprep.mubr.bf16.mxu0 0
    %596 = vmatmul.mubr.bf16.gmra.mrb[0].mxu0 %v283
    %v597 = vpop.f32.mrb[0].mxu0
    %v598 = vadd.f32 %v129, %v597
    %v599 = vpop.f32.mrb[0].mxu0
    %v600 = vpop.f32.mrb[0].mxu0
    %v601 = vadd.f32 %v129, %v600
    %v602 = vpop.f32.mrb[0].mxu0
    %603 = vmatprep.mubr.bf16.mxu0 0
    %604 = vmatmul.mubr.bf16.gmra.mrb[0].mxu0 %v284
    %v605 = vpop.f32.mrb[0].mxu0
    %v606 = vadd.f32 %v129, %v605
    %v607 = vpop.f32.mrb[0].mxu0
    %v608 = vpop.f32.mrb[0].mxu0
    %v609 = vadd.f32 %v129, %v608
    %v610 = vpop.f32.mrb[0].mxu0
    %611 = vmatprep.mubr.bf16.mxu0 0
    %612 = vmatmul.mubr.bf16.gmra.mrb[0].mxu0 %v285
    %v613 = vpop.f32.mrb[0].mxu0
    %v614 = vadd.f32 %v129, %v613
    %v615 = vpop.f32.mrb[0].mxu0
    %v616 = vpop.f32.mrb[0].mxu0
    %v617 = vadd.f32 %v129, %v616
    %v618 = vpop.f32.mrb[0].mxu0
    %619 = vmatprep.mubr.bf16.mxu0 0
    %620 = vmatmul.mubr.bf16.gmra.mrb[0].mxu0 %v286
    %v621 = vpop.f32.mrb[0].mxu0
    %v622 = vadd.f32 %v129, %v621
    %v623 = vpop.f32.mrb[0].mxu0
    %v624 = vpop.f32.mrb[0].mxu0
    %v625 = vadd.f32 %v129, %v624
    %v626 = vpop.f32.mrb[0].mxu0
    %627 = vmatprep.mubr.bf16.mxu0 0
    %628 = vmatmul.mubr.bf16.gmra.mrb[0].mxu0 %v287
    %v629 = vpop.f32.mrb[0].mxu0
    %v630 = vadd.f32 %v129, %v629
    %v631 = vpop.f32.mrb[0].mxu0
    %v632 = vpop.f32.mrb[0].mxu0
    %v633 = vadd.f32 %v129, %v632
    %v634 = vpop.f32.mrb[0].mxu0
    %635 = vmatprep.mubr.bf16.mxu0 0
    %636 = vmatmul.mubr.bf16.gmra.mrb[0].mxu0 %v288
    %v637 = vpop.f32.mrb[0].mxu0
    %v638 = vadd.f32 %v129, %v637
    %v639 = vpop.f32.mrb[0].mxu0
    %v640 = vpop.f32.mrb[0].mxu0
    %v641 = vadd.f32 %v129, %v640
    %v642 = vpop.f32.mrb[0].mxu0
    %643 = vmatprep.mubr.bf16.mxu0 0
    %644 = vmatmul.mubr.bf16.gmra.mrb[0].mxu0 %v289
    %v645 = vpop.f32.mrb[0].mxu0
    %v646 = vadd.f32 %v129, %v645
    %v647 = vpop.f32.mrb[0].mxu0
    %v648 = vpop.f32.mrb[0].mxu0
    %v649 = vadd.f32 %v129, %v648
    %v650 = vpop.f32.mrb[0].mxu0
    %651 = vmatprep.mubr.bf16.mxu0 0
    %652 = vmatmul.mubr.bf16.gmra.mrb[0].mxu0 %v290
    %v653 = vpop.f32.mrb[0].mxu0
    %v654 = vadd.f32 %v129, %v653
    %v655 = vpop.f32.mrb[0].mxu0
    %v656 = vpop.f32.mrb[0].mxu0
    %v657 = vadd.f32 %v129, %v656
    %v658 = vpop.f32.mrb[0].mxu0
    %659 = vdwg.mxu0
    %vm660 = vcmp.ge.f32.partialorder %v406, 0.0
    %vm661 = vcmp.ge.f32.partialorder %v409, 0.0
    %vm662 = vcmp.ge.f32.partialorder %v414, 0.0
    %vm663 = vcmp.ge.f32.partialorder %v417, 0.0
    %vm664 = vcmp.ge.f32.partialorder %v422, 0.0
    %vm665 = vcmp.ge.f32.partialorder %v425, 0.0
    %vm666 = vcmp.ge.f32.partialorder %v430, 0.0
    %vm667 = vcmp.ge.f32.partialorder %v433, 0.0
    %vm668 = vcmp.ge.f32.partialorder %v438, 0.0
    %vm669 = vcmp.ge.f32.partialorder %v441, 0.0
    %vm670 = vcmp.ge.f32.partialorder %v446, 0.0
    %vm671 = vcmp.ge.f32.partialorder %v449, 0.0
    %vm672 = vcmp.ge.f32.partialorder %v454, 0.0
    %vm673 = vcmp.ge.f32.partialorder %v457, 0.0
    %vm674 = vcmp.ge.f32.partialorder %v462, 0.0
    %vm675 = vcmp.ge.f32.partialorder %v465, 0.0
    %vm676 = vcmp.ge.f32.partialorder %v470, 0.0
    %vm677 = vcmp.ge.f32.partialorder %v473, 0.0
    %vm678 = vcmp.ge.f32.partialorder %v478, 0.0
    %vm679 = vcmp.ge.f32.partialorder %v481, 0.0
    %vm680 = vcmp.ge.f32.partialorder %v486, 0.0
    %vm681 = vcmp.ge.f32.partialorder %v489, 0.0
    %vm682 = vcmp.ge.f32.partialorder %v494, 0.0
    %vm683 = vcmp.ge.f32.partialorder %v497, 0.0
    %vm684 = vcmp.ge.f32.partialorder %v502, 0.0
    %vm685 = vcmp.ge.f32.partialorder %v505, 0.0
    %vm686 = vcmp.ge.f32.partialorder %v510, 0.0
    %vm687 = vcmp.ge.f32.partialorder %v513, 0.0
    %vm688 = vcmp.ge.f32.partialorder %v518, 0.0
    %vm689 = vcmp.ge.f32.partialorder %v521, 0.0
    %vm690 = vcmp.ge.f32.partialorder %v526, 0.0
    %vm691 = vcmp.ge.f32.partialorder %v529, 0.0
    %vm692 = vcmp.ge.f32.partialorder %v534, 0.0
    %vm693 = vcmp.ge.f32.partialorder %v537, 0.0
    %vm694 = vcmp.ge.f32.partialorder %v542, 0.0
    %vm695 = vcmp.ge.f32.partialorder %v545, 0.0
    %vm696 = vcmp.ge.f32.partialorder %v550, 0.0
    %vm697 = vcmp.ge.f32.partialorder %v553, 0.0
    %vm698 = vcmp.ge.f32.partialorder %v558, 0.0
    %vm699 = vcmp.ge.f32.partialorder %v561, 0.0
    %vm700 = vcmp.ge.f32.partialorder %v566, 0.0
    %vm701 = vcmp.ge.f32.partialorder %v569, 0.0
    %vm702 = vcmp.ge.f32.partialorder %v574, 0.0
    %vm703 = vcmp.ge.f32.partialorder %v577, 0.0
    %vm704 = vcmp.ge.f32.partialorder %v582, 0.0
    %vm705 = vcmp.ge.f32.partialorder %v585, 0.0
    %vm706 = vcmp.ge.f32.partialorder %v590, 0.0
    %vm707 = vcmp.ge.f32.partialorder %v593, 0.0
    %vm708 = vcmp.ge.f32.partialorder %v598, 0.0
    %vm709 = vcmp.ge.f32.partialorder %v601, 0.0
    %vm710 = vcmp.ge.f32.partialorder %v606, 0.0
    %vm711 = vcmp.ge.f32.partialorder %v609, 0.0
    %vm712 = vcmp.ge.f32.partialorder %v614, 0.0
    %vm713 = vcmp.ge.f32.partialorder %v617, 0.0
    %vm714 = vcmp.ge.f32.partialorder %v622, 0.0
    %vm715 = vcmp.ge.f32.partialorder %v625, 0.0
    %vm716 = vcmp.ge.f32.partialorder %v630, 0.0
    %vm717 = vcmp.ge.f32.partialorder %v633, 0.0
    %vm718 = vcmp.ge.f32.partialorder %v638, 0.0
    %vm719 = vcmp.ge.f32.partialorder %v641, 0.0
    %vm720 = vcmp.ge.f32.partialorder %v646, 0.0
    %vm721 = vcmp.ge.f32.partialorder %v649, 0.0
    %vm722 = vcmp.ge.f32.partialorder %v654, 0.0
    %vm723 = vcmp.ge.f32.partialorder %v657, 0.0
    %v724 = vmul.f32 %v406, 0.2
    %v725 = vmul.f32 %v409, 0.2
    %v726 = vmul.f32 %v414, 0.2
    %v727 = vmul.f32 %v417, 0.2
    %v728 = vmul.f32 %v422, 0.2
    %v729 = vmul.f32 %v425, 0.2
    %v730 = vmul.f32 %v430, 0.2
    %v731 = vmul.f32 %v433, 0.2
    %v732 = vmul.f32 %v438, 0.2
    %v733 = vmul.f32 %v441, 0.2
    %v734 = vmul.f32 %v446, 0.2
    %v735 = vmul.f32 %v449, 0.2
    %v736 = vmul.f32 %v454, 0.2
    %v737 = vmul.f32 %v457, 0.2
    %v738 = vmul.f32 %v462, 0.2
    %v739 = vmul.f32 %v465, 0.2
    %v740 = vmul.f32 %v470, 0.2
    %v741 = vmul.f32 %v473, 0.2
    %v742 = vmul.f32 %v478, 0.2
    %v743 = vmul.f32 %v481, 0.2
    %v744 = vmul.f32 %v486, 0.2
    %v745 = vmul.f32 %v489, 0.2
    %v746 = vmul.f32 %v494, 0.2
    %v747 = vmul.f32 %v497, 0.2
    %v748 = vmul.f32 %v502, 0.2
    %v749 = vmul.f32 %v505, 0.2
    %v750 = vmul.f32 %v510, 0.2
    %v751 = vmul.f32 %v513, 0.2
    %v752 = vmul.f32 %v518, 0.2
    %v753 = vmul.f32 %v521, 0.2
    %v754 = vmul.f32 %v526, 0.2
    %v755 = vmul.f32 %v529, 0.2
    %v756 = vmul.f32 %v534, 0.2
    %v757 = vmul.f32 %v537, 0.2
    %v758 = vmul.f32 %v542, 0.2
    %v759 = vmul.f32 %v545, 0.2
    %v760 = vmul.f32 %v550, 0.2
    %v761 = vmul.f32 %v553, 0.2
    %v762 = vmul.f32 %v558, 0.2
    %v763 = vmul.f32 %v561, 0.2
    %v764 = vmul.f32 %v566, 0.2
    %v765 = vmul.f32 %v569, 0.2
    %v766 = vmul.f32 %v574, 0.2
    %v767 = vmul.f32 %v577, 0.2
    %v768 = vmul.f32 %v582, 0.2
    %v769 = vmul.f32 %v585, 0.2
    %v770 = vmul.f32 %v590, 0.2
    %v771 = vmul.f32 %v593, 0.2
    %v772 = vmul.f32 %v598, 0.2
    %v773 = vmul.f32 %v601, 0.2
    %v774 = vmul.f32 %v606, 0.2
    %v775 = vmul.f32 %v609, 0.2
    %v776 = vmul.f32 %v614, 0.2
    %v777 = vmul.f32 %v617, 0.2
    %v778 = vmul.f32 %v622, 0.2
    %v779 = vmul.f32 %v625, 0.2
    %v780 = vmul.f32 %v630, 0.2
    %v781 = vmul.f32 %v633, 0.2
    %v782 = vmul.f32 %v638, 0.2
    %v783 = vmul.f32 %v641, 0.2
    %v784 = vmul.f32 %v646, 0.2
    %v785 = vmul.f32 %v649, 0.2
    %v786 = vmul.f32 %v654, 0.2
    %v787 = vmul.f32 %v657, 0.2
    %v788 = vsel %vm660, %v406, %v724
    %v789 = vsel %vm661, %v409, %v725
    %v790 = vsel %vm662, %v414, %v726
    %v791 = vsel %vm663, %v417, %v727
    %v792 = vsel %vm664, %v422, %v728
    %v793 = vsel %vm665, %v425, %v729
    %v794 = vsel %vm666, %v430, %v730
    %v795 = vsel %vm667, %v433, %v731
    %v796 = vsel %vm668, %v438, %v732
    %v797 = vsel %vm669, %v441, %v733
    %v798 = vsel %vm670, %v446, %v734
    %v799 = vsel %vm671, %v449, %v735
    %v800 = vsel %vm672, %v454, %v736
    %v801 = vsel %vm673, %v457, %v737
    %v802 = vsel %vm674, %v462, %v738
    %v803 = vsel %vm675, %v465, %v739
    %v804 = vsel %vm676, %v470, %v740
    %v805 = vsel %vm677, %v473, %v741
    %v806 = vsel %vm678, %v478, %v742
    %v807 = vsel %vm679, %v481, %v743
    %v808 = vsel %vm680, %v486, %v744
    %v809 = vsel %vm681, %v489, %v745
    %v810 = vsel %vm682, %v494, %v746
    %v811 = vsel %vm683, %v497, %v747
    %v812 = vsel %vm684, %v502, %v748
    %v813 = vsel %vm685, %v505, %v749
    %v814 = vsel %vm686, %v510, %v750
    %v815 = vsel %vm687, %v513, %v751
    %v816 = vsel %vm688, %v518, %v752
    %v817 = vsel %vm689, %v521, %v753
    %v818 = vsel %vm690, %v526, %v754
    %v819 = vsel %vm691, %v529, %v755
    %v820 = vsel %vm692, %v534, %v756
    %v821 = vsel %vm693, %v537, %v757
    %v822 = vsel %vm694, %v542, %v758
    %v823 = vsel %vm695, %v545, %v759
    %v824 = vsel %vm696, %v550, %v760
    %v825 = vsel %vm697, %v553, %v761
    %v826 = vsel %vm698, %v558, %v762
    %v827 = vsel %vm699, %v561, %v763
    %v828 = vsel %vm700, %v566, %v764
    %v829 = vsel %vm701, %v569, %v765
    %v830 = vsel %vm702, %v574, %v766
    %v831 = vsel %vm703, %v577, %v767
    %v832 = vsel %vm704, %v582, %v768
    %v833 = vsel %vm705, %v585, %v769
    %v834 = vsel %vm706, %v590, %v770
    %v835 = vsel %vm707, %v593, %v771
    %v836 = vsel %vm708, %v598, %v772
    %v837 = vsel %vm709, %v601, %v773
    %v838 = vsel %vm710, %v606, %v774
    %v839 = vsel %vm711, %v609, %v775
    %v840 = vsel %vm712, %v614, %v776
    %v841 = vsel %vm713, %v617, %v777
    %v842 = vsel %vm714, %v622, %v778
    %v843 = vsel %vm715, %v625, %v779
    %v844 = vsel %vm716, %v630, %v780
    %v845 = vsel %vm717, %v633, %v781
    %v846 = vsel %vm718, %v638, %v782
    %v847 = vsel %vm719, %v641, %v783
    %v848 = vsel %vm720, %v646, %v784
    %v849 = vsel %vm721, %v649, %v785
    %v850 = vsel %vm722, %v654, %v786
    %v851 = vsel %vm723, %v657, %v787
    %v852 = vpack.c.bf16 %v789, %v788
    %v853 = vpack.c.bf16 %v791, %v790
    %v854 = vpack.c.bf16 %v793, %v792
    %v855 = vpack.c.bf16 %v795, %v794
    %v856 = vpack.c.bf16 %v797, %v796
    %v857 = vpack.c.bf16 %v799, %v798
    %v858 = vpack.c.bf16 %v801, %v800
    %v859 = vpack.c.bf16 %v803, %v802
    %v860 = vpack.c.bf16 %v805, %v804
    %v861 = vpack.c.bf16 %v807, %v806
    %v862 = vpack.c.bf16 %v809, %v808
    %v863 = vpack.c.bf16 %v811, %v810
    %v864 = vpack.c.bf16 %v813, %v812
    %v865 = vpack.c.bf16 %v815, %v814
    %v866 = vpack.c.bf16 %v817, %v816
    %v867 = vpack.c.bf16 %v819, %v818
    %v868 = vpack.c.bf16 %v821, %v820
    %v869 = vpack.c.bf16 %v823, %v822
    %v870 = vpack.c.bf16 %v825, %v824
    %v871 = vpack.c.bf16 %v827, %v826
    %v872 = vpack.c.bf16 %v829, %v828
    %v873 = vpack.c.bf16 %v831, %v830
    %v874 = vpack.c.bf16 %v833, %v832
    %v875 = vpack.c.bf16 %v835, %v834
    %v876 = vpack.c.bf16 %v837, %v836
    %v877 = vpack.c.bf16 %v839, %v838
    %v878 = vpack.c.bf16 %v841, %v840
    %v879 = vpack.c.bf16 %v843, %v842
    %v880 = vpack.c.bf16 %v845, %v844
    %v881 = vpack.c.bf16 %v847, %v846
    %v882 = vpack.c.bf16 %v849, %v848
    %v883 = vpack.c.bf16 %v851, %v850
    %v916 = vunpack.c.l.b16 %v852
    %v917 = vunpack.c.h.b16 %v852
    %v918 = vunpack.c.l.b16 %v853
    %v919 = vunpack.c.h.b16 %v853
    %v920 = vunpack.c.l.b16 %v854
    %v921 = vunpack.c.h.b16 %v854
    %v922 = vunpack.c.l.b16 %v855
    %v923 = vunpack.c.h.b16 %v855
    %v924 = vunpack.c.l.b16 %v856
    %v925 = vunpack.c.h.b16 %v856
    %v926 = vunpack.c.l.b16 %v857
    %v927 = vunpack.c.h.b16 %v857
    %v928 = vunpack.c.l.b16 %v858
    %v929 = vunpack.c.h.b16 %v858
    %v930 = vunpack.c.l.b16 %v859
    %v931 = vunpack.c.h.b16 %v859
    %v932 = vunpack.c.l.b16 %v860
    %v933 = vunpack.c.h.b16 %v860
    %v934 = vunpack.c.l.b16 %v861
    %v935 = vunpack.c.h.b16 %v861
    %v936 = vunpack.c.l.b16 %v862
    %v937 = vunpack.c.h.b16 %v862
    %v938 = vunpack.c.l.b16 %v863
    %v939 = vunpack.c.h.b16 %v863
    %v940 = vunpack.c.l.b16 %v864
    %v941 = vunpack.c.h.b16 %v864
    %v942 = vunpack.c.l.b16 %v865
    %v943 = vunpack.c.h.b16 %v865
    %v944 = vunpack.c.l.b16 %v866
    %v945 = vunpack.c.h.b16 %v866
    %v946 = vunpack.c.l.b16 %v867
    %v947 = vunpack.c.h.b16 %v867
    %v948 = vunpack.c.l.b16 %v868
    %v949 = vunpack.c.h.b16 %v868
    %v950 = vunpack.c.l.b16 %v869
    %v951 = vunpack.c.h.b16 %v869
    %v952 = vunpack.c.l.b16 %v870
    %v953 = vunpack.c.h.b16 %v870
    %v954 = vunpack.c.l.b16 %v871
    %v955 = vunpack.c.h.b16 %v871
    %v956 = vunpack.c.l.b16 %v872
    %v957 = vunpack.c.h.b16 %v872
    %v958 = vunpack.c.l.b16 %v873
    %v959 = vunpack.c.h.b16 %v873
    %v960 = vunpack.c.l.b16 %v874
    %v961 = vunpack.c.h.b16 %v874
    %v962 = vunpack.c.l.b16 %v875
    %v963 = vunpack.c.h.b16 %v875
    %v964 = vunpack.c.l.b16 %v876
    %v965 = vunpack.c.h.b16 %v876
    %v966 = vunpack.c.l.b16 %v877
    %v967 = vunpack.c.h.b16 %v877
    %v968 = vunpack.c.l.b16 %v878
    %v969 = vunpack.c.h.b16 %v878
    %v970 = vunpack.c.l.b16 %v879
    %v971 = vunpack.c.h.b16 %v879
    %v972 = vunpack.c.l.b16 %v880
    %v973 = vunpack.c.h.b16 %v880
    %v974 = vunpack.c.l.b16 %v881
    %v975 = vunpack.c.h.b16 %v881
    %v976 = vunpack.c.l.b16 %v882
    %v977 = vunpack.c.h.b16 %v882
    %v978 = vunpack.c.l.b16 %v883
    %v979 = vunpack.c.h.b16 %v883
    %v980 = vpack.c.b16 %v916, %v916
    %v981 = vpack.c.b16 %v917, %v917
    %v982 = vpack.c.b16 %v918, %v918
    %v983 = vpack.c.b16 %v919, %v919
    %v984 = vpack.c.b16 %v920, %v920
    %v985 = vpack.c.b16 %v921, %v921
    %v986 = vpack.c.b16 %v922, %v922
    %v987 = vpack.c.b16 %v923, %v923
    %v988 = vpack.c.b16 %v924, %v924
    %v989 = vpack.c.b16 %v925, %v925
    %v990 = vpack.c.b16 %v926, %v926
    %v991 = vpack.c.b16 %v927, %v927
    %v992 = vpack.c.b16 %v928, %v928
    %v993 = vpack.c.b16 %v929, %v929
    %v994 = vpack.c.b16 %v930, %v930
    %v995 = vpack.c.b16 %v931, %v931
    %v996 = vpack.c.b16 %v932, %v932
    %v997 = vpack.c.b16 %v933, %v933
    %v998 = vpack.c.b16 %v934, %v934
    %v999 = vpack.c.b16 %v935, %v935
    %v1000 = vpack.c.b16 %v936, %v936
    %v1001 = vpack.c.b16 %v937, %v937
    %v1002 = vpack.c.b16 %v938, %v938
    %v1003 = vpack.c.b16 %v939, %v939
    %v1004 = vpack.c.b16 %v940, %v940
    %v1005 = vpack.c.b16 %v941, %v941
    %v1006 = vpack.c.b16 %v942, %v942
    %v1007 = vpack.c.b16 %v943, %v943
    %v1008 = vpack.c.b16 %v944, %v944
    %v1009 = vpack.c.b16 %v945, %v945
    %v1010 = vpack.c.b16 %v946, %v946
    %v1011 = vpack.c.b16 %v947, %v947
    %v1012 = vpack.c.b16 %v948, %v948
    %v1013 = vpack.c.b16 %v949, %v949
    %v1014 = vpack.c.b16 %v950, %v950
    %v1015 = vpack.c.b16 %v951, %v951
    %v1016 = vpack.c.b16 %v952, %v952
    %v1017 = vpack.c.b16 %v953, %v953
    %v1018 = vpack.c.b16 %v954, %v954
    %v1019 = vpack.c.b16 %v955, %v955
    %v1020 = vpack.c.b16 %v956, %v956
    %v1021 = vpack.c.b16 %v957, %v957
    %v1022 = vpack.c.b16 %v958, %v958
    %v1023 = vpack.c.b16 %v959, %v959
    %v1024 = vpack.c.b16 %v960, %v960
    %v1025 = vpack.c.b16 %v961, %v961
    %v1026 = vpack.c.b16 %v962, %v962
    %v1027 = vpack.c.b16 %v963, %v963
    %v1028 = vpack.c.b16 %v964, %v964
    %v1029 = vpack.c.b16 %v965, %v965
    %v1030 = vpack.c.b16 %v966, %v966
    %v1031 = vpack.c.b16 %v967, %v967
    %v1032 = vpack.c.b16 %v968, %v968
    %v1033 = vpack.c.b16 %v969, %v969
    %v1034 = vpack.c.b16 %v970, %v970
    %v1035 = vpack.c.b16 %v971, %v971
    %v1036 = vpack.c.b16 %v972, %v972
    %v1037 = vpack.c.b16 %v973, %v973
    %v1038 = vpack.c.b16 %v974, %v974
    %v1039 = vpack.c.b16 %v975, %v975
    %v1040 = vpack.c.b16 %v976, %v976
    %v1041 = vpack.c.b16 %v977, %v977
    %v1042 = vpack.c.b16 %v978, %v978
    %v1043 = vpack.c.b16 %v979, %v979
    %1108 = vst [vmem:[#allocation7] sm:$0xf] %v980
    %1109 = vst [vmem:[#allocation7 + $0x4] sm:$0xf] %v981
    %1110 = vst [vmem:[#allocation7 + $0x8] sm:$0xf] %v982
    %1111 = vst [vmem:[#allocation7 + $0xc] sm:$0xf] %v983
    %1112 = vst [vmem:[#allocation7 + $0x10] sm:$0xf] %v984
    %1113 = vst [vmem:[#allocation7 + $0x14] sm:$0xf] %v985
    %1114 = vst [vmem:[#allocation7 + $0x18] sm:$0xf] %v986
    %1115 = vst [vmem:[#allocation7 + $0x1c] sm:$0xf] %v987
    %1116 = vst [vmem:[#allocation7 + $0x20] sm:$0xf] %v988
    %1117 = vst [vmem:[#allocation7 + $0x24] sm:$0xf] %v989
    %1118 = vst [vmem:[#allocation7 + $0x28] sm:$0xf] %v990
    %1119 = vst [vmem:[#allocation7 + $0x2c] sm:$0xf] %v991
    %1120 = vst [vmem:[#allocation7 + $0x30] sm:$0xf] %v992
    %1121 = vst [vmem:[#allocation7 + $0x34] sm:$0xf] %v993
    %1122 = vst [vmem:[#allocation7 + $0x38] sm:$0xf] %v994
    %1123 = vst [vmem:[#allocation7 + $0x3c] sm:$0xf] %v995
    %1124 = vst [vmem:[#allocation7 + $0x40] sm:$0xf] %v996
    %1125 = vst [vmem:[#allocation7 + $0x44] sm:$0xf] %v997
    %1126 = vst [vmem:[#allocation7 + $0x48] sm:$0xf] %v998
    %1127 = vst [vmem:[#allocation7 + $0x4c] sm:$0xf] %v999
    %1128 = vst [vmem:[#allocation7 + $0x50] sm:$0xf] %v1000
    %1129 = vst [vmem:[#allocation7 + $0x54] sm:$0xf] %v1001
    %1130 = vst [vmem:[#allocation7 + $0x58] sm:$0xf] %v1002
    %1131 = vst [vmem:[#allocation7 + $0x5c] sm:$0xf] %v1003
    %1132 = vst [vmem:[#allocation7 + $0x60] sm:$0xf] %v1004
    %1133 = vst [vmem:[#allocation7 + $0x64] sm:$0xf] %v1005
    %1134 = vst [vmem:[#allocation7 + $0x68] sm:$0xf] %v1006
    %1135 = vst [vmem:[#allocation7 + $0x6c] sm:$0xf] %v1007
    %1136 = vst [vmem:[#allocation7 + $0x70] sm:$0xf] %v1008
    %1137 = vst [vmem:[#allocation7 + $0x74] sm:$0xf] %v1009
    %1138 = vst [vmem:[#allocation7 + $0x78] sm:$0xf] %v1010
    %1139 = vst [vmem:[#allocation7 + $0x7c] sm:$0xf] %v1011
    %1140 = vst [vmem:[#allocation7 + $0x80] sm:$0xf] %v1012
    %1141 = vst [vmem:[#allocation7 + $0x84] sm:$0xf] %v1013
    %1142 = vst [vmem:[#allocation7 + $0x88] sm:$0xf] %v1014
    %1143 = vst [vmem:[#allocation7 + $0x8c] sm:$0xf] %v1015
    %1144 = vst [vmem:[#allocation7 + $0x90] sm:$0xf] %v1016
    %1145 = vst [vmem:[#allocation7 + $0x94] sm:$0xf] %v1017
    %1146 = vst [vmem:[#allocation7 + $0x98] sm:$0xf] %v1018
    %1147 = vst [vmem:[#allocation7 + $0x9c] sm:$0xf] %v1019
    %1148 = vst [vmem:[#allocation7 + $0xa0] sm:$0xf] %v1020
    %1149 = vst [vmem:[#allocation7 + $0xa4] sm:$0xf] %v1021
    %1150 = vst [vmem:[#allocation7 + $0xa8] sm:$0xf] %v1022
    %1151 = vst [vmem:[#allocation7 + $0xac] sm:$0xf] %v1023
    %1152 = vst [vmem:[#allocation7 + $0xb0] sm:$0xf] %v1024
    %1153 = vst [vmem:[#allocation7 + $0xb4] sm:$0xf] %v1025
    %1154 = vst [vmem:[#allocation7 + $0xb8] sm:$0xf] %v1026
    %1155 = vst [vmem:[#allocation7 + $0xbc] sm:$0xf] %v1027
    %1156 = vst [vmem:[#allocation7 + $0xc0] sm:$0xf] %v1028
    %1157 = vst [vmem:[#allocation7 + $0xc4] sm:$0xf] %v1029
    %1158 = vst [vmem:[#allocation7 + $0xc8] sm:$0xf] %v1030
    %1159 = vst [vmem:[#allocation7 + $0xcc] sm:$0xf] %v1031
    %1160 = vst [vmem:[#allocation7 + $0xd0] sm:$0xf] %v1032
    %1161 = vst [vmem:[#allocation7 + $0xd4] sm:$0xf] %v1033
    %1162 = vst [vmem:[#allocation7 + $0xd8] sm:$0xf] %v1034
    %1163 = vst [vmem:[#allocation7 + $0xdc] sm:$0xf] %v1035
    %1164 = vst [vmem:[#allocation7 + $0xe0] sm:$0xf] %v1036
    %1165 = vst [vmem:[#allocation7 + $0xe4] sm:$0xf] %v1037
    %1166 = vst [vmem:[#allocation7 + $0xe8] sm:$0xf] %v1038
    %1167 = vst [vmem:[#allocation7 + $0xec] sm:$0xf] %v1039
    %1168 = vst [vmem:[#allocation7 + $0xf0] sm:$0xf] %v1040
    %1169 = vst [vmem:[#allocation7 + $0xf4] sm:$0xf] %v1041
    %1170 = vst [vmem:[#allocation7 + $0xf8] sm:$0xf] %v1042
    %1171 = vst [vmem:[#allocation7 + $0xfc] sm:$0xf] %v1043
    // Predicated region
    $region22: #{tpu_custom_call.1} parent=1 // pred_check
      _
    $region23: #{tpu_custom_call.1} parent=1 // pred_check_branch
      %1173 = sbr.rel (0) target = $region25
    $region24: #{tpu_custom_call.1} parent=1 // pred_region
      %s1175 = ssub.s32 4096, 4096
      %1176 = vsyncadd [#allocation4], %s1175
      %s1177 = sshll.u32 [#allocation7], 4
      %s1178 = int_to_ptr.vmem [resolvable:$true] %s1177
      %1183 = dma.vmem_to_hbm [thread:$0]  %s1178, 4096, %s3, [#allocation4], 64, 64, 4
    $region25: #{tpu_custom_call.1} parent=1 // pred_fallthru
      _
    // Predicated region
    $region26: #{tpu_custom_call.1} parent=1 // pred_check
      _
    $region27: #{tpu_custom_call.1} parent=1 // pred_check_branch
      %1185 = sbr.rel (0) target = $region29
    $region28: #{tpu_custom_call.1} parent=1 // pred_region
      %1186 = dma.done [#allocation4], 4096
    $region29: #{tpu_custom_call.1} parent=1 // pred_fallthru
      _
    %1187 = vsyncpa [#allocation3], 1
    %1188 = vsyncpa [#allocation6], 1
    %1189 = vsyncpa [#allocation4], 1

</llo_original>
